<compile_context>
chip_gen: v7x
topology: tpu7x:2x2x1
jax: 0.10.0
libtpu: 0.0.40
codegen_flags: <defaults>
</compile_context>

<pallas_src>
import functools
import math

import numpy as np
import jax
import jax.numpy as jnp
from jax.experimental import pallas as pl
from jax.experimental.pallas import tpu as pltpu

# ----------------------------- problem setup -------------------------------
C = 8                      # channel multiplicity of irreps_in1
IN1 = [(C, 0), (C, 1)]     # (mul, l) list for irreps_in1
IN2 = [(1, 0), (1, 1)]     # (mul, l) list for irreps_in2  (mul must be 1)
OUT_TARGET_LS = {0, 1}     # ls contained in target irreps_out "0e+1e"

assert all(m == 1 for m, _ in IN2), "'uvu' fold below assumes irreps_in2 multiplicity == 1"


def slices_of(irreps):
    s, i = [], 0
    for (_, l) in irreps:
        d = 2 * l + 1
        s.append(slice(i, i + d))
        i += d
    return s, i


def build_instructions():
    """Mirror of Simple_TensorProduct_oTchannel._get_instruction (uvu, weighted)."""
    instructions, irreps_out = [], []
    for i, (mul1, l1) in enumerate(IN1):
        for j, (_, l2) in enumerate(IN2):
            for l_out in range(abs(l1 - l2), l1 + l2 + 1):
                if l_out in OUT_TARGET_LS:
                    k = len(irreps_out)
                    irreps_out.append((mul1, l_out))
                    instructions.append((i, j, k, l1, l2, l_out))
    return instructions, irreps_out


def wigner_3j(l1, l2, l3):
    """Real-basis Wigner-3j constants for l <= 1 (up to the standard overall sign)."""
    if (l1, l2, l3) == (0, 0, 0):
        return np.ones((1, 1, 1), np.float32)
    if (l1, l2, l3) == (0, 1, 1):
        return (np.eye(3, dtype=np.float32) / math.sqrt(3)).reshape(1, 3, 3)
    if (l1, l2, l3) == (1, 0, 1):
        return (np.eye(3, dtype=np.float32) / math.sqrt(3)).reshape(3, 1, 3)
    if (l1, l2, l3) == (1, 1, 0):
        return (np.eye(3, dtype=np.float32) / math.sqrt(3)).reshape(3, 3, 1)
    if (l1, l2, l3) == (1, 1, 1):
        eps = np.zeros((3, 3, 3), np.float32)
        for a, b, c in [(0, 1, 2), (1, 2, 0), (2, 0, 1)]:
            eps[a, b, c] = 1.0
            eps[a, c, b] = -1.0
        return eps / math.sqrt(6)
    raise NotImplementedError((l1, l2, l3))


def build_params(key):
    """Packed W3J[D1,D2,K], per-row/channel scale W_out[K,C]=alpha*weight, metadata.
    Reproduces the module's normalization ('component'/'element') + rescale init."""
    instructions, irreps_out = build_instructions()
    s1, D1 = slices_of(IN1)
    s2, D2 = slices_of(IN2)
    s_out, K = slices_of(irreps_out)

    def num_elements(ins):            # 'uvu'
        return IN2[ins[1]][0]

    alphas = []
    for ins in instructions:
        l_out = ins[5]
        alpha = 2 * l_out + 1
        x = sum(num_elements(i2) for i2 in instructions if i2[2] == ins[2])
        alphas.append(math.sqrt(alpha / x))

    # internal weights: randn(weight_numel), rescaled per output-slice fan-in
    weight_numel = sum(IN1[i][0] * IN2[j][0] for (i, j, *_rest) in instructions)
    raw_w = np.asarray(jax.random.normal(key, (weight_numel,), jnp.float32))

    slices_fan_in = {}
    for ins in instructions:
        slices_fan_in[ins[2]] = slices_fan_in.get(ins[2], 0) + IN2[ins[1]][0]

    scaled_w = raw_w.copy()
    off = 0
    for ins in instructions:
        n = IN1[ins[0]][0] * IN2[ins[1]][0]
        scaled_w[off:off + n] *= 1.0 / math.sqrt(slices_fan_in[ins[2]])
        off += n

    W3J_full = np.zeros((D1, D2, K), np.float32)
    W_out = np.zeros((K, C), np.float32)
    off = 0
    for ins, alpha in zip(instructions, alphas):
        i, j, k, l1, l2, lo = ins
        W3J_full[s1[i], s2[j], s_out[k]] = wigner_3j(l1, l2, lo)
        n = IN1[i][0] * IN2[j][0]
        w = scaled_w[off:off + n].reshape(IN1[i][0], IN2[j][0])   # (C, 1)
        off += n
        W_out[s_out[k], :] = alpha * w[:, 0][None, :]

    meta = dict(instructions=instructions, alphas=alphas, s1=s1, s2=s2,
                s_out=s_out, D1=D1, D2=D2, K=K, scaled_w=scaled_w)
    return W3J_full, W_out, meta


def fold_weights(w3j_full, w_out):
    """Host-side fold into matmul weights oriented for module-layout operands.

    Wc[j, (i,u'), (k,u)] = W_out[k,u] * W3J[i,j,k] * delta(u,u')
    columns of x1 are ordered (i,u'), columns of the output are ordered (k,u),
    so the kernel's per-j matmul needs no layout changes.  Shape (D2, D1*C, K*C).
    """
    D1, D2, K = w3j_full.shape
    C_ = w_out.shape[1]
    w3j_jik = np.transpose(w3j_full, (1, 0, 2))              # (D2, D1, K)
    wc = np.zeros((D2, D1, C_, K, C_), np.float32)
    for u in range(C_):
        wc[:, :, u, :, u] = w3j_jik * w_out[:, u][None, None, :]
    return jnp.asarray(wc.reshape(D2, D1 * C_, K * C_))


# ------------------------------ Pallas kernel ------------------------------
def tp_kernel(x1_ref, x2_ref, wc_ref, o_ref, *, d2):
    # x1_ref: (tb, D1*C)       module layout, columns ordered (i, u)
    # x2_ref: (tb, D2)
    # wc_ref: (D2, D1*C, K*C)  folded alpha * weight * wigner3j (resident, constant block)
    # o_ref : (tb, K*C)        columns ordered (k, u) -> reshapes to (B, K, C) for free
    x1 = x1_ref[...]
    x2 = x2_ref[...]
    # Partial products formed in flight, fed straight into accumulated MXU dots:
    # no named scratch, no VMEM round-trip for the (tb, D2*D1*C) intermediate.
    acc = jnp.dot(x1 * x2[:, 0:1], wc_ref[0], preferred_element_type=jnp.float32)
    for j in range(1, d2):                       # D2 = 4, static unroll
        acc = acc + jnp.dot(x1 * x2[:, j:j + 1], wc_ref[j],
                            preferred_element_type=jnp.float32)
    o_ref[...] = acc.astype(o_ref.dtype)


def _pick_tb(batch):
    # Single-TC chips (v5e/v6e): one big step minimizes the ~0.35 us/step fixed
    # cost.  On v7x pass tb = batch // 2 explicitly so both TensorCores get one
    # step each via dimension_semantics=("parallel",).
    if batch <= 1024:
        return ((batch + 7) // 8) * 8            # one (possibly padded) step
    for cand in (1024, 512, 256, 128):
        if batch % cand == 0:
            return cand
    return 1024                                  # ragged tail handled by padding


def tensor_product_pallas(x, y, wc, *, tb=None):
    """x: (B, D1, C) 'oTchannel' layout, y: (B, D2, 1), wc: folded (D2, D1*C, K*C)."""
    B_, D1, C_ = x.shape
    D2 = y.shape[1]
    assert y.shape[2] == 1
    D2w, D1C, KC = wc.shape
    assert D2w == D2 and D1C == D1 * C_
    K = KC // C_

    # Contiguous reshapes only — no transposes, no copies.
    x1 = x.reshape(B_, D1 * C_)
    x2 = y.reshape(B_, D2)

    if tb is None:
        tb = _pick_tb(B_)
    assert tb % 8 == 0, "batch tile must be a multiple of 8 sublanes"

    pad = (-B_) % tb
    if pad:                                      # ragged-tail path (not hit when B % tb == 0)
        x1 = jnp.pad(x1, ((0, pad), (0, 0)))
        x2 = jnp.pad(x2, ((0, pad), (0, 0)))
    Bp = B_ + pad

    flops = 2 * Bp * D2 * D1C * KC + Bp * D2 * D1C
    bytes_accessed = 4 * (Bp * D1C + Bp * D2 + wc.size + Bp * KC)

    kernel = functools.partial(tp_kernel, d2=D2)

    out_flat = pl.pallas_call(
        kernel,
        out_shape=jax.ShapeDtypeStruct((Bp, KC), jnp.float32),
        grid_spec=pltpu.PrefetchScalarGridSpec(
            num_scalar_prefetch=0,
            grid=(Bp // tb,),
            in_specs=[
                pl.BlockSpec((tb, D1C), lambda b: (b, 0)),
                pl.BlockSpec((tb, D2), lambda b: (b, 0)),
                # constant index_map -> fetched once, resident across grid steps
                # (could be single-buffered via pipeline_mode=pl.Buffered(1);
                #  skipped — the extra buffer is only ~45 KiB of VMEM)
                pl.BlockSpec((D2, D1C, KC), lambda b: (0, 0, 0)),
            ],
            out_specs=pl.BlockSpec((tb, KC), lambda b: (b, 0)),
        ),
        compiler_params=pltpu.CompilerParams(
            dimension_semantics=("parallel",)),
        cost_estimate=pl.CostEstimate(flops=flops, transcendentals=0,
                                      bytes_accessed=bytes_accessed),
    )(x1, x2, wc)

    if pad:
        out_flat = out_flat[:B_]
    # (B, K*C) -> (B, K, C) is a contiguous reshape: module layout, no copy.
    return out_flat.reshape(B_, K, C_)


# --------------------------- pure-JAX reference ----------------------------
def reference(x, y, meta):
    """Direct transcription of the torch fx codegen ('uvu' with weight)."""
    outs = []
    off = 0
    w_flat = jnp.asarray(meta["scaled_w"])
    for ins, alpha in zip(meta["instructions"], meta["alphas"]):
        i, j, _k, l1, l2, lo = ins
        x1 = x[:, meta["s1"][i], :]            # (B, 2l1+1, C)
        x2 = y[:, meta["s2"][j], :]            # (B, 2l2+1, 1)
        w3j = jnp.asarray(wigner_3j(l1, l2, lo))
        n = IN1[i][0] * IN2[j][0]
        w = w_flat[off:off + n].reshape(IN1[i][0], IN2[j][0])
        off += n
        xx = jnp.einsum('ziu,zjv,ijk->zkuv', x1, x2, w3j)
        res = jnp.einsum('uv,zkuv->zku', w, xx)
        outs.append(alpha * res)
    return jnp.concatenate(outs, axis=1)


# ---------------------------------- main -----------------------------------
if __name__ == "__main__":
    key = jax.random.PRNGKey(0)
    kx, ky, kw = jax.random.split(key, 3)

    W3J_full, W_out, meta = build_params(kw)
    D1, D2, K = meta["D1"], meta["D2"], meta["K"]
    Wc = fold_weights(W3J_full, W_out)            # (D2, D1*C, K*C) = (4, 32, 88)

    B = 256                                       # small test batch
    x = jax.random.normal(kx, (B, D1, C), jnp.float32)   # (batch, basis_in1, channels)
    y = jax.random.normal(ky, (B, D2, 1), jnp.float32)   # (batch, basis_in2, mul=1)

    out = tensor_product_pallas(x, y, Wc, tb=128)        # grid of 2 steps
    out = jax.block_until_ready(out)

    ref = reference(x, y, meta)
    assert out.shape == (B, K, C), (out.shape, (B, K, C))
    np.testing.assert_allclose(np.asarray(out), np.asarray(ref), rtol=1e-4, atol=1e-4)

    print("KERNEL_OK")
</pallas_src>

<mosaic_0001>
module attributes {stable_mosaic.version = 11 : i64} {
  func.func @tp_kernel(%arg0: i32, %arg1: memref<128x32xf32, #tpu.memory_space<vmem>>, %arg2: memref<128x4xf32, #tpu.memory_space<vmem>>, %arg3: memref<4x32x88xf32, #tpu.memory_space<vmem>>, %arg4: memref<128x88xf32, #tpu.memory_space<vmem>>) attributes {dimension_semantics = [#tpu.dimension_semantics<parallel>], iteration_bounds = array<i64: 2>, scalar_prefetch = 0 : i64, scratch_operands = 0 : i64, tpu.core_type = #tpu.core_type<tc>, window_params = [{transform_indices = @transform_0, window_bounds = array<i64: 128, 32>}, {transform_indices = @transform_1, window_bounds = array<i64: 128, 4>}, {pipeline_mode = #tpu.pipeline_mode<synchronous>, transform_indices = @transform_2, window_bounds = array<i64: 4, 32, 88>}, {transform_indices = @transform_3, window_bounds = array<i64: 128, 88>}]} {
    %c0 = arith.constant 0 : index
    %c0_0 = arith.constant 0 : index
    %0 = vector.load %arg1[%c0, %c0_0] : memref<128x32xf32, #tpu.memory_space<vmem>>, vector<128x32xf32>
    %c0_1 = arith.constant 0 : index
    %c0_2 = arith.constant 0 : index
    %1 = vector.load %arg2[%c0_1, %c0_2] : memref<128x4xf32, #tpu.memory_space<vmem>>, vector<128x4xf32>
    %2 = vector.extract_strided_slice %1 {offsets = [0, 0], sizes = [128, 1], strides = [1, 1]} : vector<128x4xf32> to vector<128x1xf32>
    %3 = vector.broadcast %2 : vector<128x1xf32> to vector<128x32xf32>
    %4 = arith.mulf %0, %3 : vector<128x32xf32>
    %c0_3 = arith.constant 0 : index
    %c0_4 = arith.constant 0 : index
    %c0_5 = arith.constant 0 : index
    %5 = vector.load %arg3[%c0_3, %c0_4, %c0_5] : memref<4x32x88xf32, #tpu.memory_space<vmem>>, vector<1x32x88xf32>
    %6 = vector.shape_cast %5 : vector<1x32x88xf32> to vector<32x88xf32>
    %cst = arith.constant dense<0.000000e+00> : vector<128x88xf32>
    %7 = tpu.matmul %4, %6, %cst {dimension_numbers = #tpu.dot_dimension_numbers<[1], [0], [0], [1], [0, 0, 1, 1], [], []>} : vector<128x32xf32>, vector<32x88xf32>, vector<128x88xf32> -> vector<128x88xf32>
    %8 = vector.extract_strided_slice %1 {offsets = [0, 1], sizes = [128, 1], strides = [1, 1]} : vector<128x4xf32> to vector<128x1xf32>
    %9 = vector.broadcast %8 : vector<128x1xf32> to vector<128x32xf32>
    %10 = arith.mulf %0, %9 : vector<128x32xf32>
    %c1 = arith.constant 1 : index
    %c0_6 = arith.constant 0 : index
    %c0_7 = arith.constant 0 : index
    %11 = vector.load %arg3[%c1, %c0_6, %c0_7] : memref<4x32x88xf32, #tpu.memory_space<vmem>>, vector<1x32x88xf32>
    %12 = vector.shape_cast %11 : vector<1x32x88xf32> to vector<32x88xf32>
    %cst_8 = arith.constant dense<0.000000e+00> : vector<128x88xf32>
    %13 = tpu.matmul %10, %12, %cst_8 {dimension_numbers = #tpu.dot_dimension_numbers<[1], [0], [0], [1], [0, 0, 1, 1], [], []>} : vector<128x32xf32>, vector<32x88xf32>, vector<128x88xf32> -> vector<128x88xf32>
    %14 = arith.addf %7, %13 : vector<128x88xf32>
    %15 = vector.extract_strided_slice %1 {offsets = [0, 2], sizes = [128, 1], strides = [1, 1]} : vector<128x4xf32> to vector<128x1xf32>
    %16 = vector.broadcast %15 : vector<128x1xf32> to vector<128x32xf32>
    %17 = arith.mulf %0, %16 : vector<128x32xf32>
    %c2 = arith.constant 2 : index
    %c0_9 = arith.constant 0 : index
    %c0_10 = arith.constant 0 : index
    %18 = vector.load %arg3[%c2, %c0_9, %c0_10] : memref<4x32x88xf32, #tpu.memory_space<vmem>>, vector<1x32x88xf32>
    %19 = vector.shape_cast %18 : vector<1x32x88xf32> to vector<32x88xf32>
    %cst_11 = arith.constant dense<0.000000e+00> : vector<128x88xf32>
    %20 = tpu.matmul %17, %19, %cst_11 {dimension_numbers = #tpu.dot_dimension_numbers<[1], [0], [0], [1], [0, 0, 1, 1], [], []>} : vector<128x32xf32>, vector<32x88xf32>, vector<128x88xf32> -> vector<128x88xf32>
    %21 = arith.addf %14, %20 : vector<128x88xf32>
    %22 = vector.extract_strided_slice %1 {offsets = [0, 3], sizes = [128, 1], strides = [1, 1]} : vector<128x4xf32> to vector<128x1xf32>
    %23 = vector.broadcast %22 : vector<128x1xf32> to vector<128x32xf32>
    %24 = arith.mulf %0, %23 : vector<128x32xf32>
    %c3 = arith.constant 3 : index
    %c0_12 = arith.constant 0 : index
    %c0_13 = arith.constant 0 : index
    %25 = vector.load %arg3[%c3, %c0_12, %c0_13] : memref<4x32x88xf32, #tpu.memory_space<vmem>>, vector<1x32x88xf32>
    %26 = vector.shape_cast %25 : vector<1x32x88xf32> to vector<32x88xf32>
    %cst_14 = arith.constant dense<0.000000e+00> : vector<128x88xf32>
    %27 = tpu.matmul %24, %26, %cst_14 {dimension_numbers = #tpu.dot_dimension_numbers<[1], [0], [0], [1], [0, 0, 1, 1], [], []>} : vector<128x32xf32>, vector<32x88xf32>, vector<128x88xf32> -> vector<128x88xf32>
    %28 = arith.addf %21, %27 : vector<128x88xf32>
    %c0_15 = arith.constant 0 : index
    %c0_16 = arith.constant 0 : index
    %29 = vector.load %arg4[%c0_15, %c0_16] : memref<128x88xf32, #tpu.memory_space<vmem>>, vector<128x88xf32>
    tpu.vector_store %arg4[%c0_15, %c0_16], %28 {strides = array<i32>} : memref<128x88xf32, #tpu.memory_space<vmem>>, vector<128x88xf32>,
    return
  }
  func.func @transform_0(%arg0: i32) -> (i32, i32) {
    %c0_i32 = arith.constant 0 : i32
    %c0_i32_0 = arith.constant 0 : i32
    return %arg0, %c0_i32 : i32, i32
  }
  func.func @transform_1(%arg0: i32) -> (i32, i32) {
    %c0_i32 = arith.constant 0 : i32
    %c0_i32_0 = arith.constant 0 : i32
    return %arg0, %c0_i32 : i32, i32
  }
  func.func @transform_2(%arg0: i32) -> (i32, i32, i32) {
    %c0_i32 = arith.constant 0 : i32
    %c0_i32_0 = arith.constant 0 : i32
    %c0_i32_1 = arith.constant 0 : i32
    %c0_i32_2 = arith.constant 0 : i32
    return %c0_i32, %c0_i32_0, %c0_i32_1 : i32, i32, i32
  }
  func.func @transform_3(%arg0: i32) -> (i32, i32) {
    %c0_i32 = arith.constant 0 : i32
    %c0_i32_0 = arith.constant 0 : i32
    return %arg0, %c0_i32 : i32, i32
  }
}

</mosaic_0001>

<llo_original>
// kernel: tpu_custom_call.1
$region0: #{tpu_custom_call.1}
  #allocation0 [shape = 'u32[]', space=smem, size = 0x4, offset = 0x4, fixed_abs, tag = 'smem constant byte address 0x4 - core index']
  #allocation1 [shape = 'u32[144,128]{1,0:T(1,128)}', space=vmem, size = 0x12000, scoped, tag = 'internal scratch']
  %s0 = inlined_call_operand.vmem [shape: f32[256,32], index: 0, kind: input, shape index: {}]
  %s1 = inlined_call_operand.vmem [shape: f32[256,4], index: 1, kind: input, shape index: {}]
  %s2 = inlined_call_operand.vmem [shape: f32[4,32,88], index: 2, kind: input, shape index: {}]
  %s3 = inlined_call_operand.vmem [shape: f32[256,88], index: 3, kind: output, shape index: {}]
  %s4 = sld [smem:[#allocation0]]
  $region45: #{tpu_custom_call.1} parent=0
    _
  %s6 = ssub.s32 1, %s4
  %s7 = scalar_select 0, %s6, %s4
  loop: start=0, step=1, limit=4
  $region2: #{tpu_custom_call.1} parent=0 // loop_pre_header
    _
  $region3: #{tpu_custom_call.1} parent=0 // loop_header
    %s9 = sphi 0, %s13
    %p10 = scmp.ge.s32.totalorder %s9, 4
    %s19 = sphi 0, %s21
    %s22 = sphi 0, %s19
    %s23 = sphi 0, %s22
    %s39 = sphi 0, %s23
    %s45 = sphi 0, %s47
    %s48 = sphi 0, %s45
    %s49 = sphi 0, %s48
    %s65 = sphi 0, %s49
    %s69 = sphi 0, %s69
    %s71 = sphi 0, %s69
    %s72 = sphi 0, %s71
    %s86 = sphi 0, %s72
    %s92 = sphi 0, %s94
    %s95 = sphi 0, %s92
    %s96 = sphi 0, %s95
    %s112 = sphi 0, %s96
  $region4: #{tpu_custom_call.1} parent=0 // loop_header_branch
    %12 = sbr.rel (%p10) target = $region8
  $region5: #{tpu_custom_call.1} parent=0 // loop_body
    %s14 = ssub.s32 %s9, 1
    %s15 = ssub.s32 %s9, 2
    %s16 = sadd.s32 %s9, 1
    %s17 = ssub.s32 %s9, %s16
    %p18 = scmp.eq.s32.totalorder %s17, 0
    %s20 = sadd.s32 %s19, 1
    %s21 = scalar_select %p18, %s19, %s20
    %p24 = pneg %p18
    %p25 = scmp.eq.s32.totalorder %s9, 1
    %p26 = por %p24, %p25
    %p27 = scmp.ne.s32.totalorder %s19, %s22
    %p28 = scmp.eq.s32.totalorder %s9, 0
    %p29 = por %p27, %p28
    %p30 = scmp.ne.s32.totalorder %s19, %s22
    %p31 = scmp.eq.s32.totalorder %s14, 1
    %p32 = por %p30, %p31
    %p33 = scmp.ne.s32.totalorder %s22, %s23
    %p34 = scmp.eq.s32.totalorder %s14, 0
    %p35 = por %p33, %p34
    %p36 = scmp.ne.s32.totalorder %s22, %s23
    %p37 = scmp.eq.s32.totalorder %s15, 1
    %p38 = por %p36, %p37
    %p40 = scmp.ne.s32.totalorder %s23, %s39
    %p41 = scmp.eq.s32.totalorder %s15, 0
    %p42 = por %p40, %p41
    %s43 = ssub.s32 %s9, %s16
    %p44 = scmp.eq.s32.totalorder %s43, 0
    %s46 = sadd.s32 %s45, 1
    %s47 = scalar_select %p44, %s45, %s46
    %p50 = pneg %p44
    %p51 = scmp.eq.s32.totalorder %s9, 1
    %p52 = por %p50, %p51
    %p53 = scmp.ne.s32.totalorder %s45, %s48
    %p54 = scmp.eq.s32.totalorder %s9, 0
    %p55 = por %p53, %p54
    %p56 = scmp.ne.s32.totalorder %s45, %s48
    %p57 = scmp.eq.s32.totalorder %s14, 1
    %p58 = por %p56, %p57
    %p59 = scmp.ne.s32.totalorder %s48, %s49
    %p60 = scmp.eq.s32.totalorder %s14, 0
    %p61 = por %p59, %p60
    %p62 = scmp.ne.s32.totalorder %s48, %s49
    %p63 = scmp.eq.s32.totalorder %s15, 1
    %p64 = por %p62, %p63
    %p66 = scmp.ne.s32.totalorder %s49, %s65
    %p67 = scmp.eq.s32.totalorder %s15, 0
    %p68 = por %p66, %p67
    %s70 = sadd.s32 %s69, 1
    %p73 = scmp.eq.s32.totalorder %s9, 1
    %p74 = scmp.ne.s32.totalorder %s69, %s71
    %p75 = scmp.eq.s32.totalorder %s9, 0
    %p76 = por %p74, %p75
    %p77 = scmp.ne.s32.totalorder %s69, %s71
    %p78 = scmp.eq.s32.totalorder %s14, 1
    %p79 = por %p77, %p78
    %p80 = scmp.ne.s32.totalorder %s71, %s72
    %p81 = scmp.eq.s32.totalorder %s14, 0
    %p82 = por %p80, %p81
    %p83 = scmp.ne.s32.totalorder %s71, %s72
    %p84 = scmp.eq.s32.totalorder %s15, 1
    %p85 = por %p83, %p84
    %p87 = scmp.ne.s32.totalorder %s72, %s86
    %p88 = scmp.eq.s32.totalorder %s15, 0
    %p89 = por %p87, %p88
    %s90 = ssub.s32 %s9, %s16
    %p91 = scmp.eq.s32.totalorder %s90, 0
    %s93 = sadd.s32 %s92, 1
    %s94 = scalar_select %p91, %s92, %s93
    %p97 = pneg %p91
    %p98 = scmp.eq.s32.totalorder %s9, 1
    %p99 = por %p97, %p98
    %p100 = scmp.ne.s32.totalorder %s92, %s95
    %p101 = scmp.eq.s32.totalorder %s9, 0
    %p102 = por %p100, %p101
    %p103 = scmp.ne.s32.totalorder %s92, %s95
    %p104 = scmp.eq.s32.totalorder %s14, 1
    %p105 = por %p103, %p104
    %p106 = scmp.ne.s32.totalorder %s95, %s96
    %p107 = scmp.eq.s32.totalorder %s14, 0
    %p108 = por %p106, %p107
    %p109 = scmp.ne.s32.totalorder %s95, %s96
    %p110 = scmp.eq.s32.totalorder %s15, 1
    %p111 = por %p109, %p110
    %p113 = scmp.ne.s32.totalorder %s96, %s112
    %p114 = scmp.eq.s32.totalorder %s15, 0
    %p115 = por %p113, %p114
    %p116 = scmp.le.s32.totalorder 1, %s9
    %p117 = scmp.lt.s32.totalorder %s9, 3
    %p118 = pnand %p116, %p117
    %p119 = pneg %p118
    // Predicated region
    $region9: #{tpu_custom_call.1} parent=5 // pred_check
      _
    $region10: #{tpu_custom_call.1} parent=5 // pred_check_branch
      %121 = sbr.rel (%p118) target = $region12
    $region11: #{tpu_custom_call.1} parent=5 // pred_region
      %s122 = ssub.s32 %s9, 1
      // Predicated region
      $region13: #{tpu_custom_call.1} parent=11 // pred_check
        %p123 = pneg %p82
      $region14: #{tpu_custom_call.1} parent=11 // pred_check_branch
        %125 = sbr.rel (%p123) target = $region16
      $region15: #{tpu_custom_call.1} parent=11 // pred_region
        _
      $region16: #{tpu_custom_call.1} parent=11 // pred_fallthru
        _
    $region12: #{tpu_custom_call.1} parent=5 // pred_fallthru
      _
    %p126 = scmp.lt.s32.totalorder %s9, 2
    // Predicated region
    $region17: #{tpu_custom_call.1} parent=5 // pred_check
      %p127 = pneg %p126
    $region18: #{tpu_custom_call.1} parent=5 // pred_check_branch
      %129 = sbr.rel (%p127) target = $region20
    $region19: #{tpu_custom_call.1} parent=5 // pred_region
      // Predicated region
      $region21: #{tpu_custom_call.1} parent=19 // pred_check
        %p130 = pneg %p29
      $region22: #{tpu_custom_call.1} parent=19 // pred_check_branch
        %132 = sbr.rel (%p130) target = $region24
      $region23: #{tpu_custom_call.1} parent=19 // pred_region
        %s133 = smul.u32 16, %s9
        %p134 = scmp.lt.s32.totalorder %s133, 31
        %s135 = scalar_select %p134, %s133, 31
        %s136 = smul.addr %s135, 8
        %s137 = scalar_lea.vmem %s0, %s136
        %s138 = smul.u32 16, %s9
      $region24: #{tpu_custom_call.1} parent=19 // pred_fallthru
        _
      // Predicated region
      $region25: #{tpu_custom_call.1} parent=19 // pred_check
        %p139 = pneg %p55
      $region26: #{tpu_custom_call.1} parent=19 // pred_check_branch
        %141 = sbr.rel (%p139) target = $region28
      $region27: #{tpu_custom_call.1} parent=19 // pred_region
        %s142 = smul.u32 16, %s9
        %p143 = scmp.lt.s32.totalorder %s142, 31
        %s144 = scalar_select %p143, %s142, 31
        %s145 = smul.addr %s144, 8
        %s146 = scalar_lea.vmem %s1, %s145
        %s147 = smul.u32 16, %s9
      $region28: #{tpu_custom_call.1} parent=19 // pred_fallthru
        _
    $region20: #{tpu_custom_call.1} parent=5 // pred_fallthru
      _
    %p148 = scmp.le.s32.totalorder 1, %s9
    %p149 = scmp.lt.s32.totalorder %s9, 3
    %p150 = pnand %p148, %p149
    %p151 = pneg %p150
    // Predicated region
    $region29: #{tpu_custom_call.1} parent=5 // pred_check
      _
    $region30: #{tpu_custom_call.1} parent=5 // pred_check_branch
      %153 = sbr.rel (%p150) target = $region32
    $region31: #{tpu_custom_call.1} parent=5 // pred_region
      %s154 = ssub.s32 %s9, 1
      %s155 = smul.u32 16, %s14
      %p156 = scmp.lt.s32.totalorder %s155, 31
      %s157 = scalar_select %p156, %s155, 31
      %s158 = smul.addr %s157, 8
      %s159 = scalar_lea.vmem %s0, %s158
      %p160 = pneg %p35
      %p161 = pneg %p32
      %s162 = smul.u32 16, %s14
      %p163 = scmp.lt.s32.totalorder %s162, 31
      %s164 = scalar_select %p163, %s162, 31
      %s165 = smul.addr %s164, 8
      %s166 = scalar_lea.vmem %s1, %s165
      %p167 = pneg %p61
      %p168 = pneg %p58
      %p169 = pneg %p82
      %p170 = pneg %p79
      %p171 = pneg %p108
      %p172 = pneg %p105
      %s173 = smul.u32 16, %s14
      %p174 = scmp.lt.s32.totalorder %s173, 31
      %s175 = scalar_select %p174, %s173, 31
      %s176 = smul.addr %s175, 8
      %s177 = scalar_lea.vmem %s3, %s176
      %s178 = smul.u32 16, %s14
      %p179 = scmp.lt.s32.totalorder %s178, 31
      %s180 = scalar_select %p179, %s178, 31
      %s181 = smul.addr %s180, 8
      %s182 = scalar_lea.vmem %s0, %s181
      %s183 = smul.u32 16, %s14
      %s184 = smul.u32 16, %s14
      %p185 = scmp.lt.s32.totalorder %s184, 31
      %s186 = scalar_select %p185, %s184, 31
      %s187 = smul.addr %s186, 8
      %s188 = scalar_lea.vmem %s1, %s187
      %s189 = smul.u32 16, %s14
      %s190 = smul.u32 16, %s14
      %p191 = scmp.lt.s32.totalorder %s190, 31
      %s192 = scalar_select %p191, %s190, 31
      %s193 = smul.addr %s192, 8
      %s194 = scalar_lea.vmem %s3, %s193
      %s195 = smul.u32 16, %s14
      %v196 = vld [vmem:[%s182] sm:$0xff]
      %v197 = vld [vmem:[%s182 + $0x8] sm:$0xff]
      %v198 = vld [vmem:[%s182 + $0x10] sm:$0xff]
      %v199 = vld [vmem:[%s182 + $0x18] sm:$0xff]
      %v200 = vld [vmem:[%s182 + $0x20] sm:$0xff]
      %v201 = vld [vmem:[%s182 + $0x28] sm:$0xff]
      %v202 = vld [vmem:[%s182 + $0x30] sm:$0xff]
      %v203 = vld [vmem:[%s182 + $0x38] sm:$0xff]
      %v204 = vld [vmem:[%s182 + $0x40] sm:$0xff]
      %v205 = vld [vmem:[%s182 + $0x48] sm:$0xff]
      %v206 = vld [vmem:[%s182 + $0x50] sm:$0xff]
      %v207 = vld [vmem:[%s182 + $0x58] sm:$0xff]
      %v208 = vld [vmem:[%s182 + $0x60] sm:$0xff]
      %v209 = vld [vmem:[%s182 + $0x68] sm:$0xff]
      %v210 = vld [vmem:[%s182 + $0x70] sm:$0xff]
      %v211 = vld [vmem:[%s182 + $0x78] sm:$0xff]
      %v212 = vld [vmem:[%s188] sm:$0xff]
      %v213 = vld [vmem:[%s188 + $0x8] sm:$0xff]
      %v214 = vld [vmem:[%s188 + $0x10] sm:$0xff]
      %v215 = vld [vmem:[%s188 + $0x18] sm:$0xff]
      %v216 = vld [vmem:[%s188 + $0x20] sm:$0xff]
      %v217 = vld [vmem:[%s188 + $0x28] sm:$0xff]
      %v218 = vld [vmem:[%s188 + $0x30] sm:$0xff]
      %v219 = vld [vmem:[%s188 + $0x38] sm:$0xff]
      %v220 = vld [vmem:[%s188 + $0x40] sm:$0xff]
      %v221 = vld [vmem:[%s188 + $0x48] sm:$0xff]
      %v222 = vld [vmem:[%s188 + $0x50] sm:$0xff]
      %v223 = vld [vmem:[%s188 + $0x58] sm:$0xff]
      %v224 = vld [vmem:[%s188 + $0x60] sm:$0xff]
      %v225 = vld [vmem:[%s188 + $0x68] sm:$0xff]
      %v226 = vld [vmem:[%s188 + $0x70] sm:$0xff]
      %v227 = vld [vmem:[%s188 + $0x78] sm:$0xff]
      %229 = vset.pattern.permute.xlu0 0
      %230 = vperm.xlu0 %229, %v212
      %v231 = vpop.permute.xlu0 %230
      %234 = vset.pattern.permute.xlu0 0
      %235 = vperm.xlu0 %234, %v213
      %v236 = vpop.permute.xlu0 %235
      %239 = vset.pattern.permute.xlu0 0
      %240 = vperm.xlu0 %239, %v214
      %v241 = vpop.permute.xlu0 %240
      %244 = vset.pattern.permute.xlu0 0
      %245 = vperm.xlu0 %244, %v215
      %v246 = vpop.permute.xlu0 %245
      %249 = vset.pattern.permute.xlu0 0
      %250 = vperm.xlu0 %249, %v216
      %v251 = vpop.permute.xlu0 %250
      %254 = vset.pattern.permute.xlu0 0
      %255 = vperm.xlu0 %254, %v217
      %v256 = vpop.permute.xlu0 %255
      %259 = vset.pattern.permute.xlu0 0
      %260 = vperm.xlu0 %259, %v218
      %v261 = vpop.permute.xlu0 %260
      %264 = vset.pattern.permute.xlu0 0
      %265 = vperm.xlu0 %264, %v219
      %v266 = vpop.permute.xlu0 %265
      %269 = vset.pattern.permute.xlu0 0
      %270 = vperm.xlu0 %269, %v220
      %v271 = vpop.permute.xlu0 %270
      %274 = vset.pattern.permute.xlu0 0
      %275 = vperm.xlu0 %274, %v221
      %v276 = vpop.permute.xlu0 %275
      %279 = vset.pattern.permute.xlu0 0
      %280 = vperm.xlu0 %279, %v222
      %v281 = vpop.permute.xlu0 %280
      %284 = vset.pattern.permute.xlu0 0
      %285 = vperm.xlu0 %284, %v223
      %v286 = vpop.permute.xlu0 %285
      %289 = vset.pattern.permute.xlu0 0
      %290 = vperm.xlu0 %289, %v224
      %v291 = vpop.permute.xlu0 %290
      %294 = vset.pattern.permute.xlu0 0
      %295 = vperm.xlu0 %294, %v225
      %v296 = vpop.permute.xlu0 %295
      %299 = vset.pattern.permute.xlu0 0
      %300 = vperm.xlu0 %299, %v226
      %v301 = vpop.permute.xlu0 %300
      %304 = vset.pattern.permute.xlu0 0
      %305 = vperm.xlu0 %304, %v227
      %v306 = vpop.permute.xlu0 %305
      %v308 = vmul.f32 %v196, %v231
      %v309 = vmul.f32 %v197, %v236
      %v310 = vmul.f32 %v198, %v241
      %v311 = vmul.f32 %v199, %v246
      %v312 = vmul.f32 %v200, %v251
      %v313 = vmul.f32 %v201, %v256
      %v314 = vmul.f32 %v202, %v261
      %v315 = vmul.f32 %v203, %v266
      %v316 = vmul.f32 %v204, %v271
      %v317 = vmul.f32 %v205, %v276
      %v318 = vmul.f32 %v206, %v281
      %v319 = vmul.f32 %v207, %v286
      %v320 = vmul.f32 %v208, %v291
      %v321 = vmul.f32 %v209, %v296
      %v322 = vmul.f32 %v210, %v301
      %v323 = vmul.f32 %v211, %v306
      %v324 = vld [vmem:[%s2] sm:$0xff]
      %v325 = vld [vmem:[%s2 + $0x8] sm:$0xff]
      %v326 = vld [vmem:[%s2 + $0x10] sm:$0xff]
      %v327 = vld [vmem:[%s2 + $0x18] sm:$0xff]
      %328 = vset.pattern.permute.xlu0 1
      %329 = vperm.xlu0 %328, %v212
      %v330 = vpop.permute.xlu0 %329
      %332 = vset.pattern.permute.xlu0 1
      %333 = vperm.xlu0 %332, %v213
      %v334 = vpop.permute.xlu0 %333
      %336 = vset.pattern.permute.xlu0 1
      %337 = vperm.xlu0 %336, %v214
      %v338 = vpop.permute.xlu0 %337
      %340 = vset.pattern.permute.xlu0 1
      %341 = vperm.xlu0 %340, %v215
      %v342 = vpop.permute.xlu0 %341
      %344 = vset.pattern.permute.xlu0 1
      %345 = vperm.xlu0 %344, %v216
      %v346 = vpop.permute.xlu0 %345
      %348 = vset.pattern.permute.xlu0 1
      %349 = vperm.xlu0 %348, %v217
      %v350 = vpop.permute.xlu0 %349
      %352 = vset.pattern.permute.xlu0 1
      %353 = vperm.xlu0 %352, %v218
      %v354 = vpop.permute.xlu0 %353
      %356 = vset.pattern.permute.xlu0 1
      %357 = vperm.xlu0 %356, %v219
      %v358 = vpop.permute.xlu0 %357
      %360 = vset.pattern.permute.xlu0 1
      %361 = vperm.xlu0 %360, %v220
      %v362 = vpop.permute.xlu0 %361
      %364 = vset.pattern.permute.xlu0 1
      %365 = vperm.xlu0 %364, %v221
      %v366 = vpop.permute.xlu0 %365
      %368 = vset.pattern.permute.xlu0 1
      %369 = vperm.xlu0 %368, %v222
      %v370 = vpop.permute.xlu0 %369
      %372 = vset.pattern.permute.xlu0 1
      %373 = vperm.xlu0 %372, %v223
      %v374 = vpop.permute.xlu0 %373
      %376 = vset.pattern.permute.xlu0 1
      %377 = vperm.xlu0 %376, %v224
      %v378 = vpop.permute.xlu0 %377
      %380 = vset.pattern.permute.xlu0 1
      %381 = vperm.xlu0 %380, %v225
      %v382 = vpop.permute.xlu0 %381
      %384 = vset.pattern.permute.xlu0 1
      %385 = vperm.xlu0 %384, %v226
      %v386 = vpop.permute.xlu0 %385
      %388 = vset.pattern.permute.xlu0 1
      %389 = vperm.xlu0 %388, %v227
      %v390 = vpop.permute.xlu0 %389
      %v392 = vmul.f32 %v196, %v330
      %v393 = vmul.f32 %v197, %v334
      %v394 = vmul.f32 %v198, %v338
      %v395 = vmul.f32 %v199, %v342
      %v396 = vmul.f32 %v200, %v346
      %v397 = vmul.f32 %v201, %v350
      %v398 = vmul.f32 %v202, %v354
      %v399 = vmul.f32 %v203, %v358
      %v400 = vmul.f32 %v204, %v362
      %v401 = vmul.f32 %v205, %v366
      %v402 = vmul.f32 %v206, %v370
      %v403 = vmul.f32 %v207, %v374
      %v404 = vmul.f32 %v208, %v378
      %v405 = vmul.f32 %v209, %v382
      %v406 = vmul.f32 %v210, %v386
      %v407 = vmul.f32 %v211, %v390
      %s408 = scalar_lea.vmem %s2, 32
      %v409 = vld [vmem:[%s408] sm:$0xff]
      %v410 = vld [vmem:[%s408 + $0x8] sm:$0xff]
      %v411 = vld [vmem:[%s408 + $0x10] sm:$0xff]
      %v412 = vld [vmem:[%s408 + $0x18] sm:$0xff]
      %vm413 = vcmask 261120
      %v415 = vsel %vm413, %v392, 0
      %v418 = vsel %vm413, %v393, 0
      %v421 = vsel %vm413, %v394, 0
      %v424 = vsel %vm413, %v395, 0
      %v427 = vsel %vm413, %v396, 0
      %v430 = vsel %vm413, %v397, 0
      %v433 = vsel %vm413, %v398, 0
      %v436 = vsel %vm413, %v399, 0
      %v439 = vsel %vm413, %v400, 0
      %v442 = vsel %vm413, %v401, 0
      %v445 = vsel %vm413, %v402, 0
      %v448 = vsel %vm413, %v403, 0
      %v451 = vsel %vm413, %v404, 0
      %v454 = vsel %vm413, %v405, 0
      %v457 = vsel %vm413, %v406, 0
      %v460 = vsel %vm413, %v407, 0
      %462 = vmatprep.subr.mxu0 0.0
      %463 = vmatpush1.msra.mxu0 %v409
      %464 = vmatprep.subr.mxu0 0.0
      %465 = vmatpush1.msra.mxu0 %v410
      %466 = vmatprep.subr.mxu0 0.0
      %467 = vmatpush1.msra.mxu0 %v411
      %468 = vmatprep.subr.mxu0 0.0
      %469 = vmatpush1.msra.mxu0 %v412
      %470 = vmatprep.subr.mxu0 0.0
      %471 = vmatpush1.msra.mxu0 0.0
      %472 = vmatprep.subr.mxu0 0.0
      %473 = vmatpush1.msra.mxu0 0.0
      %474 = vmatprep.subr.mxu0 0.0
      %475 = vmatpush1.msra.mxu0 0.0
      %476 = vmatprep.subr.mxu0 0.0
      %477 = vmatpush1.msra.mxu0 0.0
      %478 = vmatprep.subr.mxu0 0.0
      %479 = vmatpush1.msra.mxu0 0.0
      %480 = vmatprep.subr.mxu0 0.0
      %481 = vmatpush1.msra.mxu0 0.0
      %482 = vmatprep.subr.mxu0 0.0
      %483 = vmatpush1.msra.mxu0 0.0
      %484 = vmatprep.subr.mxu0 0.0
      %485 = vmatpush1.msra.mxu0 0.0
      %486 = vmatprep.subr.mxu0 0.0
      %487 = vmatpush1.msra.mxu0 0.0
      %488 = vmatprep.subr.mxu0 0.0
      %489 = vmatpush1.msra.mxu0 0.0
      %490 = vmatprep.subr.mxu0 0.0
      %491 = vmatpush1.msra.mxu0 0.0
      %492 = vmatprep.subr.mxu0 0.0
      %493 = vmatpush1.msra.mxu0 0.0
      %494 = vmatprep.subr.mxu0 0.0
      %495 = vmatpush1.msra.mxu0 0.0
      %496 = vmatprep.subr.mxu0 0.0
      %497 = vmatpush1.msra.mxu0 0.0
      %498 = vmatprep.subr.mxu0 0.0
      %499 = vmatpush1.msra.mxu0 0.0
      %500 = vmatprep.subr.mxu0 0.0
      %501 = vmatpush1.msra.mxu0 0.0
      %502 = vmatprep.subr.mxu0 0.0
      %503 = vmatpush1.msra.mxu0 0.0
      %504 = vmatprep.subr.mxu0 0.0
      %505 = vmatpush1.msra.mxu0 0.0
      %506 = vmatprep.subr.mxu0 0.0
      %507 = vmatpush1.msra.mxu0 0.0
      %508 = vmatprep.subr.mxu0 0.0
      %509 = vmatpush1.msra.mxu0 0.0
      %510 = vmatprep.subr.mxu0 0.0
      %511 = vmatpush1.msra.mxu0 0.0
      %512 = vmatprep.subr.mxu0 0.0
      %513 = vmatpush1.msra.mxu0 0.0
      %514 = vmatprep.subr.mxu0 0.0
      %515 = vmatpush1.msra.mxu0 0.0
      %516 = vmatprep.subr.mxu0 0.0
      %517 = vmatpush1.msra.mxu0 0.0
      %518 = vmatprep.subr.mxu0 0.0
      %519 = vmatpush1.msra.mxu0 0.0
      %520 = vmatprep.subr.mxu0 0.0
      %521 = vmatpush1.msra.mxu0 0.0
      %522 = vmatprep.subr.mxu0 0.0
      %523 = vmatpush1.msra.mxu0 0.0
      %524 = vmatprep.subr.mxu0 0.0
      %525 = vmatpush1.msra.mxu0 0.0
      %526 = vmatprep.mubr.f32.mxu0 0.0
      %527 = vmatmul.mubr.f32.gmra.mrb[0].mxu0 %v415
      %v528 = vpop.f32.mrb[0].mxu0
      %v529 = vadd.f32 0.0, %v528
      %v530 = vpop.f32.mrb[0].mxu0
      %531 = vmatprep.mubr.f32.mxu0 0.0
      %532 = vmatmul.mubr.f32.gmra.mrb[0].mxu0 %v418
      %v533 = vpop.f32.mrb[0].mxu0
      %v534 = vadd.f32 0.0, %v533
      %v535 = vpop.f32.mrb[0].mxu0
      %536 = vmatprep.mubr.f32.mxu0 0.0
      %537 = vmatmul.mubr.f32.gmra.mrb[0].mxu0 %v421
      %v538 = vpop.f32.mrb[0].mxu0
      %v539 = vadd.f32 0.0, %v538
      %v540 = vpop.f32.mrb[0].mxu0
      %541 = vmatprep.mubr.f32.mxu0 0.0
      %542 = vmatmul.mubr.f32.gmra.mrb[0].mxu0 %v424
      %v543 = vpop.f32.mrb[0].mxu0
      %v544 = vadd.f32 0.0, %v543
      %v545 = vpop.f32.mrb[0].mxu0
      %546 = vmatprep.mubr.f32.mxu0 0.0
      %547 = vmatmul.mubr.f32.gmra.mrb[0].mxu0 %v427
      %v548 = vpop.f32.mrb[0].mxu0
      %v549 = vadd.f32 0.0, %v548
      %v550 = vpop.f32.mrb[0].mxu0
      %551 = vmatprep.mubr.f32.mxu0 0.0
      %552 = vmatmul.mubr.f32.gmra.mrb[0].mxu0 %v430
      %v553 = vpop.f32.mrb[0].mxu0
      %v554 = vadd.f32 0.0, %v553
      %v555 = vpop.f32.mrb[0].mxu0
      %556 = vmatprep.mubr.f32.mxu0 0.0
      %557 = vmatmul.mubr.f32.gmra.mrb[0].mxu0 %v433
      %v558 = vpop.f32.mrb[0].mxu0
      %v559 = vadd.f32 0.0, %v558
      %v560 = vpop.f32.mrb[0].mxu0
      %561 = vmatprep.mubr.f32.mxu0 0.0
      %562 = vmatmul.mubr.f32.gmra.mrb[0].mxu0 %v436
      %v563 = vpop.f32.mrb[0].mxu0
      %v564 = vadd.f32 0.0, %v563
      %v565 = vpop.f32.mrb[0].mxu0
      %566 = vmatprep.mubr.f32.mxu0 0.0
      %567 = vmatmul.mubr.f32.gmra.mrb[0].mxu0 %v439
      %v568 = vpop.f32.mrb[0].mxu0
      %v569 = vadd.f32 0.0, %v568
      %v570 = vpop.f32.mrb[0].mxu0
      %571 = vmatprep.mubr.f32.mxu0 0.0
      %572 = vmatmul.mubr.f32.gmra.mrb[0].mxu0 %v442
      %v573 = vpop.f32.mrb[0].mxu0
      %v574 = vadd.f32 0.0, %v573
      %v575 = vpop.f32.mrb[0].mxu0
      %576 = vmatprep.mubr.f32.mxu0 0.0
      %577 = vmatmul.mubr.f32.gmra.mrb[0].mxu0 %v445
      %v578 = vpop.f32.mrb[0].mxu0
      %v579 = vadd.f32 0.0, %v578
      %v580 = vpop.f32.mrb[0].mxu0
      %581 = vmatprep.mubr.f32.mxu0 0.0
      %582 = vmatmul.mubr.f32.gmra.mrb[0].mxu0 %v448
      %v583 = vpop.f32.mrb[0].mxu0
      %v584 = vadd.f32 0.0, %v583
      %v585 = vpop.f32.mrb[0].mxu0
      %586 = vmatprep.mubr.f32.mxu0 0.0
      %587 = vmatmul.mubr.f32.gmra.mrb[0].mxu0 %v451
      %v588 = vpop.f32.mrb[0].mxu0
      %v589 = vadd.f32 0.0, %v588
      %v590 = vpop.f32.mrb[0].mxu0
      %591 = vmatprep.mubr.f32.mxu0 0.0
      %592 = vmatmul.mubr.f32.gmra.mrb[0].mxu0 %v454
      %v593 = vpop.f32.mrb[0].mxu0
      %v594 = vadd.f32 0.0, %v593
      %v595 = vpop.f32.mrb[0].mxu0
      %596 = vmatprep.mubr.f32.mxu0 0.0
      %597 = vmatmul.mubr.f32.gmra.mrb[0].mxu0 %v457
      %v598 = vpop.f32.mrb[0].mxu0
      %v599 = vadd.f32 0.0, %v598
      %v600 = vpop.f32.mrb[0].mxu0
      %601 = vmatprep.mubr.f32.mxu0 0.0
      %602 = vmatmul.mubr.f32.gmra.mrb[0].mxu0 %v460
      %v603 = vpop.f32.mrb[0].mxu0
      %v604 = vadd.f32 0.0, %v603
      %v605 = vpop.f32.mrb[0].mxu0
      %606 = vdwg.mxu0
      %v608 = vsel %vm413, %v308, 0
      %v611 = vsel %vm413, %v309, 0
      %v614 = vsel %vm413, %v310, 0
      %v617 = vsel %vm413, %v311, 0
      %v620 = vsel %vm413, %v312, 0
      %v623 = vsel %vm413, %v313, 0
      %v626 = vsel %vm413, %v314, 0
      %v629 = vsel %vm413, %v315, 0
      %v632 = vsel %vm413, %v316, 0
      %v635 = vsel %vm413, %v317, 0
      %v638 = vsel %vm413, %v318, 0
      %v641 = vsel %vm413, %v319, 0
      %v644 = vsel %vm413, %v320, 0
      %v647 = vsel %vm413, %v321, 0
      %v650 = vsel %vm413, %v322, 0
      %v653 = vsel %vm413, %v323, 0
      %655 = vmatprep.subr.mxu0 0.0
      %656 = vmatpush1.msra.mxu0 %v324
      %657 = vmatprep.subr.mxu0 0.0
      %658 = vmatpush1.msra.mxu0 %v325
      %659 = vmatprep.subr.mxu0 0.0
      %660 = vmatpush1.msra.mxu0 %v326
      %661 = vmatprep.subr.mxu0 0.0
      %662 = vmatpush1.msra.mxu0 %v327
      %663 = vmatprep.subr.mxu0 0.0
      %664 = vmatpush1.msra.mxu0 0.0
      %665 = vmatprep.subr.mxu0 0.0
      %666 = vmatpush1.msra.mxu0 0.0
      %667 = vmatprep.subr.mxu0 0.0
      %668 = vmatpush1.msra.mxu0 0.0
      %669 = vmatprep.subr.mxu0 0.0
      %670 = vmatpush1.msra.mxu0 0.0
      %671 = vmatprep.subr.mxu0 0.0
      %672 = vmatpush1.msra.mxu0 0.0
      %673 = vmatprep.subr.mxu0 0.0
      %674 = vmatpush1.msra.mxu0 0.0
      %675 = vmatprep.subr.mxu0 0.0
      %676 = vmatpush1.msra.mxu0 0.0
      %677 = vmatprep.subr.mxu0 0.0
      %678 = vmatpush1.msra.mxu0 0.0
      %679 = vmatprep.subr.mxu0 0.0
      %680 = vmatpush1.msra.mxu0 0.0
      %681 = vmatprep.subr.mxu0 0.0
      %682 = vmatpush1.msra.mxu0 0.0
      %683 = vmatprep.subr.mxu0 0.0
      %684 = vmatpush1.msra.mxu0 0.0
      %685 = vmatprep.subr.mxu0 0.0
      %686 = vmatpush1.msra.mxu0 0.0
      %687 = vmatprep.subr.mxu0 0.0
      %688 = vmatpush1.msra.mxu0 0.0
      %689 = vmatprep.subr.mxu0 0.0
      %690 = vmatpush1.msra.mxu0 0.0
      %691 = vmatprep.subr.mxu0 0.0
      %692 = vmatpush1.msra.mxu0 0.0
      %693 = vmatprep.subr.mxu0 0.0
      %694 = vmatpush1.msra.mxu0 0.0
      %695 = vmatprep.subr.mxu0 0.0
      %696 = vmatpush1.msra.mxu0 0.0
      %697 = vmatprep.subr.mxu0 0.0
      %698 = vmatpush1.msra.mxu0 0.0
      %699 = vmatprep.subr.mxu0 0.0
      %700 = vmatpush1.msra.mxu0 0.0
      %701 = vmatprep.subr.mxu0 0.0
      %702 = vmatpush1.msra.mxu0 0.0
      %703 = vmatprep.subr.mxu0 0.0
      %704 = vmatpush1.msra.mxu0 0.0
      %705 = vmatprep.subr.mxu0 0.0
      %706 = vmatpush1.msra.mxu0 0.0
      %707 = vmatprep.subr.mxu0 0.0
      %708 = vmatpush1.msra.mxu0 0.0
      %709 = vmatprep.subr.mxu0 0.0
      %710 = vmatpush1.msra.mxu0 0.0
      %711 = vmatprep.subr.mxu0 0.0
      %712 = vmatpush1.msra.mxu0 0.0
      %713 = vmatprep.subr.mxu0 0.0
      %714 = vmatpush1.msra.mxu0 0.0
      %715 = vmatprep.subr.mxu0 0.0
      %716 = vmatpush1.msra.mxu0 0.0
      %717 = vmatprep.subr.mxu0 0.0
      %718 = vmatpush1.msra.mxu0 0.0
      %719 = vmatprep.mubr.f32.mxu0 0.0
      %720 = vmatmul.mubr.f32.gmra.mrb[0].mxu0 %v608
      %v721 = vpop.f32.mrb[0].mxu0
      %v722 = vadd.f32 %v529, %v721
      %v723 = vpop.f32.mrb[0].mxu0
      %724 = vmatprep.mubr.f32.mxu0 0.0
      %725 = vmatmul.mubr.f32.gmra.mrb[0].mxu0 %v611
      %v726 = vpop.f32.mrb[0].mxu0
      %v727 = vadd.f32 %v534, %v726
      %v728 = vpop.f32.mrb[0].mxu0
      %729 = vmatprep.mubr.f32.mxu0 0.0
      %730 = vmatmul.mubr.f32.gmra.mrb[0].mxu0 %v614
      %v731 = vpop.f32.mrb[0].mxu0
      %v732 = vadd.f32 %v539, %v731
      %v733 = vpop.f32.mrb[0].mxu0
      %734 = vmatprep.mubr.f32.mxu0 0.0
      %735 = vmatmul.mubr.f32.gmra.mrb[0].mxu0 %v617
      %v736 = vpop.f32.mrb[0].mxu0
      %v737 = vadd.f32 %v544, %v736
      %v738 = vpop.f32.mrb[0].mxu0
      %739 = vmatprep.mubr.f32.mxu0 0.0
      %740 = vmatmul.mubr.f32.gmra.mrb[0].mxu0 %v620
      %v741 = vpop.f32.mrb[0].mxu0
      %v742 = vadd.f32 %v549, %v741
      %v743 = vpop.f32.mrb[0].mxu0
      %744 = vmatprep.mubr.f32.mxu0 0.0
      %745 = vmatmul.mubr.f32.gmra.mrb[0].mxu0 %v623
      %v746 = vpop.f32.mrb[0].mxu0
      %v747 = vadd.f32 %v554, %v746
      %v748 = vpop.f32.mrb[0].mxu0
      %749 = vmatprep.mubr.f32.mxu0 0.0
      %750 = vmatmul.mubr.f32.gmra.mrb[0].mxu0 %v626
      %v751 = vpop.f32.mrb[0].mxu0
      %v752 = vadd.f32 %v559, %v751
      %v753 = vpop.f32.mrb[0].mxu0
      %754 = vmatprep.mubr.f32.mxu0 0.0
      %755 = vmatmul.mubr.f32.gmra.mrb[0].mxu0 %v629
      %v756 = vpop.f32.mrb[0].mxu0
      %v757 = vadd.f32 %v564, %v756
      %v758 = vpop.f32.mrb[0].mxu0
      %759 = vmatprep.mubr.f32.mxu0 0.0
      %760 = vmatmul.mubr.f32.gmra.mrb[0].mxu0 %v632
      %v761 = vpop.f32.mrb[0].mxu0
      %v762 = vadd.f32 %v569, %v761
      %v763 = vpop.f32.mrb[0].mxu0
      %764 = vmatprep.mubr.f32.mxu0 0.0
      %765 = vmatmul.mubr.f32.gmra.mrb[0].mxu0 %v635
      %v766 = vpop.f32.mrb[0].mxu0
      %v767 = vadd.f32 %v574, %v766
      %v768 = vpop.f32.mrb[0].mxu0
      %769 = vmatprep.mubr.f32.mxu0 0.0
      %770 = vmatmul.mubr.f32.gmra.mrb[0].mxu0 %v638
      %v771 = vpop.f32.mrb[0].mxu0
      %v772 = vadd.f32 %v579, %v771
      %v773 = vpop.f32.mrb[0].mxu0
      %774 = vmatprep.mubr.f32.mxu0 0.0
      %775 = vmatmul.mubr.f32.gmra.mrb[0].mxu0 %v641
      %v776 = vpop.f32.mrb[0].mxu0
      %v777 = vadd.f32 %v584, %v776
      %v778 = vpop.f32.mrb[0].mxu0
      %779 = vmatprep.mubr.f32.mxu0 0.0
      %780 = vmatmul.mubr.f32.gmra.mrb[0].mxu0 %v644
      %v781 = vpop.f32.mrb[0].mxu0
      %v782 = vadd.f32 %v589, %v781
      %v783 = vpop.f32.mrb[0].mxu0
      %784 = vmatprep.mubr.f32.mxu0 0.0
      %785 = vmatmul.mubr.f32.gmra.mrb[0].mxu0 %v647
      %v786 = vpop.f32.mrb[0].mxu0
      %v787 = vadd.f32 %v594, %v786
      %v788 = vpop.f32.mrb[0].mxu0
      %789 = vmatprep.mubr.f32.mxu0 0.0
      %790 = vmatmul.mubr.f32.gmra.mrb[0].mxu0 %v650
      %v791 = vpop.f32.mrb[0].mxu0
      %v792 = vadd.f32 %v599, %v791
      %v793 = vpop.f32.mrb[0].mxu0
      %794 = vmatprep.mubr.f32.mxu0 0.0
      %795 = vmatmul.mubr.f32.gmra.mrb[0].mxu0 %v653
      %v796 = vpop.f32.mrb[0].mxu0
      %v797 = vadd.f32 %v604, %v796
      %v798 = vpop.f32.mrb[0].mxu0
      %799 = vdwg.mxu0
      %800 = vset.pattern.permute.xlu0 2
      %801 = vperm.xlu0 %800, %v212
      %v802 = vpop.permute.xlu0 %801
      %804 = vset.pattern.permute.xlu0 2
      %805 = vperm.xlu0 %804, %v213
      %v806 = vpop.permute.xlu0 %805
      %808 = vset.pattern.permute.xlu0 2
      %809 = vperm.xlu0 %808, %v214
      %v810 = vpop.permute.xlu0 %809
      %812 = vset.pattern.permute.xlu0 2
      %813 = vperm.xlu0 %812, %v215
      %v814 = vpop.permute.xlu0 %813
      %816 = vset.pattern.permute.xlu0 2
      %817 = vperm.xlu0 %816, %v216
      %v818 = vpop.permute.xlu0 %817
      %820 = vset.pattern.permute.xlu0 2
      %821 = vperm.xlu0 %820, %v217
      %v822 = vpop.permute.xlu0 %821
      %824 = vset.pattern.permute.xlu0 2
      %825 = vperm.xlu0 %824, %v218
      %v826 = vpop.permute.xlu0 %825
      %828 = vset.pattern.permute.xlu0 2
      %829 = vperm.xlu0 %828, %v219
      %v830 = vpop.permute.xlu0 %829
      %832 = vset.pattern.permute.xlu0 2
      %833 = vperm.xlu0 %832, %v220
      %v834 = vpop.permute.xlu0 %833
      %836 = vset.pattern.permute.xlu0 2
      %837 = vperm.xlu0 %836, %v221
      %v838 = vpop.permute.xlu0 %837
      %840 = vset.pattern.permute.xlu0 2
      %841 = vperm.xlu0 %840, %v222
      %v842 = vpop.permute.xlu0 %841
      %844 = vset.pattern.permute.xlu0 2
      %845 = vperm.xlu0 %844, %v223
      %v846 = vpop.permute.xlu0 %845
      %848 = vset.pattern.permute.xlu0 2
      %849 = vperm.xlu0 %848, %v224
      %v850 = vpop.permute.xlu0 %849
      %852 = vset.pattern.permute.xlu0 2
      %853 = vperm.xlu0 %852, %v225
      %v854 = vpop.permute.xlu0 %853
      %856 = vset.pattern.permute.xlu0 2
      %857 = vperm.xlu0 %856, %v226
      %v858 = vpop.permute.xlu0 %857
      %860 = vset.pattern.permute.xlu0 2
      %861 = vperm.xlu0 %860, %v227
      %v862 = vpop.permute.xlu0 %861
      %v864 = vmul.f32 %v196, %v802
      %v865 = vmul.f32 %v197, %v806
      %v866 = vmul.f32 %v198, %v810
      %v867 = vmul.f32 %v199, %v814
      %v868 = vmul.f32 %v200, %v818
      %v869 = vmul.f32 %v201, %v822
      %v870 = vmul.f32 %v202, %v826
      %v871 = vmul.f32 %v203, %v830
      %v872 = vmul.f32 %v204, %v834
      %v873 = vmul.f32 %v205, %v838
      %v874 = vmul.f32 %v206, %v842
      %v875 = vmul.f32 %v207, %v846
      %v876 = vmul.f32 %v208, %v850
      %v877 = vmul.f32 %v209, %v854
      %v878 = vmul.f32 %v210, %v858
      %v879 = vmul.f32 %v211, %v862
      %s880 = scalar_lea.vmem %s2, 64
      %v881 = vld [vmem:[%s880] sm:$0xff]
      %v882 = vld [vmem:[%s880 + $0x8] sm:$0xff]
      %v883 = vld [vmem:[%s880 + $0x10] sm:$0xff]
      %v884 = vld [vmem:[%s880 + $0x18] sm:$0xff]
      %v886 = vsel %vm413, %v864, 0
      %v889 = vsel %vm413, %v865, 0
      %v892 = vsel %vm413, %v866, 0
      %v895 = vsel %vm413, %v867, 0
      %v898 = vsel %vm413, %v868, 0
      %v901 = vsel %vm413, %v869, 0
      %v904 = vsel %vm413, %v870, 0
      %v907 = vsel %vm413, %v871, 0
      %v910 = vsel %vm413, %v872, 0
      %v913 = vsel %vm413, %v873, 0
      %v916 = vsel %vm413, %v874, 0
      %v919 = vsel %vm413, %v875, 0
      %v922 = vsel %vm413, %v876, 0
      %v925 = vsel %vm413, %v877, 0
      %v928 = vsel %vm413, %v878, 0
      %v931 = vsel %vm413, %v879, 0
      %933 = vmatprep.subr.mxu0 0.0
      %934 = vmatpush1.msra.mxu0 %v881
      %935 = vmatprep.subr.mxu0 0.0
      %936 = vmatpush1.msra.mxu0 %v882
      %937 = vmatprep.subr.mxu0 0.0
      %938 = vmatpush1.msra.mxu0 %v883
      %939 = vmatprep.subr.mxu0 0.0
      %940 = vmatpush1.msra.mxu0 %v884
      %941 = vmatprep.subr.mxu0 0.0
      %942 = vmatpush1.msra.mxu0 0.0
      %943 = vmatprep.subr.mxu0 0.0
      %944 = vmatpush1.msra.mxu0 0.0
      %945 = vmatprep.subr.mxu0 0.0
      %946 = vmatpush1.msra.mxu0 0.0
      %947 = vmatprep.subr.mxu0 0.0
      %948 = vmatpush1.msra.mxu0 0.0
      %949 = vmatprep.subr.mxu0 0.0
      %950 = vmatpush1.msra.mxu0 0.0
      %951 = vmatprep.subr.mxu0 0.0
      %952 = vmatpush1.msra.mxu0 0.0
      %953 = vmatprep.subr.mxu0 0.0
      %954 = vmatpush1.msra.mxu0 0.0
      %955 = vmatprep.subr.mxu0 0.0
      %956 = vmatpush1.msra.mxu0 0.0
      %957 = vmatprep.subr.mxu0 0.0
      %958 = vmatpush1.msra.mxu0 0.0
      %959 = vmatprep.subr.mxu0 0.0
      %960 = vmatpush1.msra.mxu0 0.0
      %961 = vmatprep.subr.mxu0 0.0
      %962 = vmatpush1.msra.mxu0 0.0
      %963 = vmatprep.subr.mxu0 0.0
      %964 = vmatpush1.msra.mxu0 0.0
      %965 = vmatprep.subr.mxu0 0.0
      %966 = vmatpush1.msra.mxu0 0.0
      %967 = vmatprep.subr.mxu0 0.0
      %968 = vmatpush1.msra.mxu0 0.0
      %969 = vmatprep.subr.mxu0 0.0
      %970 = vmatpush1.msra.mxu0 0.0
      %971 = vmatprep.subr.mxu0 0.0
      %972 = vmatpush1.msra.mxu0 0.0
      %973 = vmatprep.subr.mxu0 0.0
      %974 = vmatpush1.msra.mxu0 0.0
      %975 = vmatprep.subr.mxu0 0.0
      %976 = vmatpush1.msra.mxu0 0.0
      %977 = vmatprep.subr.mxu0 0.0
      %978 = vmatpush1.msra.mxu0 0.0
      %979 = vmatprep.subr.mxu0 0.0
      %980 = vmatpush1.msra.mxu0 0.0
      %981 = vmatprep.subr.mxu0 0.0
      %982 = vmatpush1.msra.mxu0 0.0
      %983 = vmatprep.subr.mxu0 0.0
      %984 = vmatpush1.msra.mxu0 0.0
      %985 = vmatprep.subr.mxu0 0.0
      %986 = vmatpush1.msra.mxu0 0.0
      %987 = vmatprep.subr.mxu0 0.0
      %988 = vmatpush1.msra.mxu0 0.0
      %989 = vmatprep.subr.mxu0 0.0
      %990 = vmatpush1.msra.mxu0 0.0
      %991 = vmatprep.subr.mxu0 0.0
      %992 = vmatpush1.msra.mxu0 0.0
      %993 = vmatprep.subr.mxu0 0.0
      %994 = vmatpush1.msra.mxu0 0.0
      %995 = vmatprep.subr.mxu0 0.0
      %996 = vmatpush1.msra.mxu0 0.0
      %997 = vmatprep.mubr.f32.mxu0 0.0
      %998 = vmatmul.mubr.f32.gmra.mrb[0].mxu0 %v886
      %v999 = vpop.f32.mrb[0].mxu0
      %v1000 = vadd.f32 0.0, %v999
      %v1001 = vpop.f32.mrb[0].mxu0
      %1002 = vmatprep.mubr.f32.mxu0 0.0
      %1003 = vmatmul.mubr.f32.gmra.mrb[0].mxu0 %v889
      %v1004 = vpop.f32.mrb[0].mxu0
      %v1005 = vadd.f32 0.0, %v1004
      %v1006 = vpop.f32.mrb[0].mxu0
      %1007 = vmatprep.mubr.f32.mxu0 0.0
      %1008 = vmatmul.mubr.f32.gmra.mrb[0].mxu0 %v892
      %v1009 = vpop.f32.mrb[0].mxu0
      %v1010 = vadd.f32 0.0, %v1009
      %v1011 = vpop.f32.mrb[0].mxu0
      %1012 = vmatprep.mubr.f32.mxu0 0.0
      %1013 = vmatmul.mubr.f32.gmra.mrb[0].mxu0 %v895
      %v1014 = vpop.f32.mrb[0].mxu0
      %v1015 = vadd.f32 0.0, %v1014
      %v1016 = vpop.f32.mrb[0].mxu0
      %1017 = vmatprep.mubr.f32.mxu0 0.0
      %1018 = vmatmul.mubr.f32.gmra.mrb[0].mxu0 %v898
      %v1019 = vpop.f32.mrb[0].mxu0
      %v1020 = vadd.f32 0.0, %v1019
      %v1021 = vpop.f32.mrb[0].mxu0
      %1022 = vmatprep.mubr.f32.mxu0 0.0
      %1023 = vmatmul.mubr.f32.gmra.mrb[0].mxu0 %v901
      %v1024 = vpop.f32.mrb[0].mxu0
      %v1025 = vadd.f32 0.0, %v1024
      %v1026 = vpop.f32.mrb[0].mxu0
      %1027 = vmatprep.mubr.f32.mxu0 0.0
      %1028 = vmatmul.mubr.f32.gmra.mrb[0].mxu0 %v904
      %v1029 = vpop.f32.mrb[0].mxu0
      %v1030 = vadd.f32 0.0, %v1029
      %v1031 = vpop.f32.mrb[0].mxu0
      %1032 = vmatprep.mubr.f32.mxu0 0.0
      %1033 = vmatmul.mubr.f32.gmra.mrb[0].mxu0 %v907
      %v1034 = vpop.f32.mrb[0].mxu0
      %v1035 = vadd.f32 0.0, %v1034
      %v1036 = vpop.f32.mrb[0].mxu0
      %1037 = vmatprep.mubr.f32.mxu0 0.0
      %1038 = vmatmul.mubr.f32.gmra.mrb[0].mxu0 %v910
      %v1039 = vpop.f32.mrb[0].mxu0
      %v1040 = vadd.f32 0.0, %v1039
      %v1041 = vpop.f32.mrb[0].mxu0
      %1042 = vmatprep.mubr.f32.mxu0 0.0
      %1043 = vmatmul.mubr.f32.gmra.mrb[0].mxu0 %v913
      %v1044 = vpop.f32.mrb[0].mxu0
      %v1045 = vadd.f32 0.0, %v1044
      %v1046 = vpop.f32.mrb[0].mxu0
      %1047 = vmatprep.mubr.f32.mxu0 0.0
      %1048 = vmatmul.mubr.f32.gmra.mrb[0].mxu0 %v916
      %v1049 = vpop.f32.mrb[0].mxu0
      %v1050 = vadd.f32 0.0, %v1049
      %v1051 = vpop.f32.mrb[0].mxu0
      %1052 = vmatprep.mubr.f32.mxu0 0.0
      %1053 = vmatmul.mubr.f32.gmra.mrb[0].mxu0 %v919
      %v1054 = vpop.f32.mrb[0].mxu0
      %v1055 = vadd.f32 0.0, %v1054
      %v1056 = vpop.f32.mrb[0].mxu0
      %1057 = vmatprep.mubr.f32.mxu0 0.0
      %1058 = vmatmul.mubr.f32.gmra.mrb[0].mxu0 %v922
      %v1059 = vpop.f32.mrb[0].mxu0
      %v1060 = vadd.f32 0.0, %v1059
      %v1061 = vpop.f32.mrb[0].mxu0
      %1062 = vmatprep.mubr.f32.mxu0 0.0
      %1063 = vmatmul.mubr.f32.gmra.mrb[0].mxu0 %v925
      %v1064 = vpop.f32.mrb[0].mxu0
      %v1065 = vadd.f32 0.0, %v1064
      %v1066 = vpop.f32.mrb[0].mxu0
      %1067 = vmatprep.mubr.f32.mxu0 0.0
      %1068 = vmatmul.mubr.f32.gmra.mrb[0].mxu0 %v928
      %v1069 = vpop.f32.mrb[0].mxu0
      %v1070 = vadd.f32 0.0, %v1069
      %v1071 = vpop.f32.mrb[0].mxu0
      %1072 = vmatprep.mubr.f32.mxu0 0.0
      %1073 = vmatmul.mubr.f32.gmra.mrb[0].mxu0 %v931
      %v1074 = vpop.f32.mrb[0].mxu0
      %v1075 = vadd.f32 0.0, %v1074
      %v1076 = vpop.f32.mrb[0].mxu0
      %1077 = vdwg.mxu0
      %v1078 = vadd.f32 %v722, %v1000
      %v1079 = vadd.f32 %v727, %v1005
      %v1080 = vadd.f32 %v732, %v1010
      %v1081 = vadd.f32 %v737, %v1015
      %v1082 = vadd.f32 %v742, %v1020
      %v1083 = vadd.f32 %v747, %v1025
      %v1084 = vadd.f32 %v752, %v1030
      %v1085 = vadd.f32 %v757, %v1035
      %v1086 = vadd.f32 %v762, %v1040
      %v1087 = vadd.f32 %v767, %v1045
      %v1088 = vadd.f32 %v772, %v1050
      %v1089 = vadd.f32 %v777, %v1055
      %v1090 = vadd.f32 %v782, %v1060
      %v1091 = vadd.f32 %v787, %v1065
      %v1092 = vadd.f32 %v792, %v1070
      %v1093 = vadd.f32 %v797, %v1075
      %1094 = vset.pattern.permute.xlu0 3
      %1095 = vperm.xlu0 %1094, %v212
      %v1096 = vpop.permute.xlu0 %1095
      %1098 = vset.pattern.permute.xlu0 3
      %1099 = vperm.xlu0 %1098, %v213
      %v1100 = vpop.permute.xlu0 %1099
      %1102 = vset.pattern.permute.xlu0 3
      %1103 = vperm.xlu0 %1102, %v214
      %v1104 = vpop.permute.xlu0 %1103
      %1106 = vset.pattern.permute.xlu0 3
      %1107 = vperm.xlu0 %1106, %v215
      %v1108 = vpop.permute.xlu0 %1107
      %1110 = vset.pattern.permute.xlu0 3
      %1111 = vperm.xlu0 %1110, %v216
      %v1112 = vpop.permute.xlu0 %1111
      %1114 = vset.pattern.permute.xlu0 3
      %1115 = vperm.xlu0 %1114, %v217
      %v1116 = vpop.permute.xlu0 %1115
      %1118 = vset.pattern.permute.xlu0 3
      %1119 = vperm.xlu0 %1118, %v218
      %v1120 = vpop.permute.xlu0 %1119
      %1122 = vset.pattern.permute.xlu0 3
      %1123 = vperm.xlu0 %1122, %v219
      %v1124 = vpop.permute.xlu0 %1123
      %1126 = vset.pattern.permute.xlu0 3
      %1127 = vperm.xlu0 %1126, %v220
      %v1128 = vpop.permute.xlu0 %1127
      %1130 = vset.pattern.permute.xlu0 3
      %1131 = vperm.xlu0 %1130, %v221
      %v1132 = vpop.permute.xlu0 %1131
      %1134 = vset.pattern.permute.xlu0 3
      %1135 = vperm.xlu0 %1134, %v222
      %v1136 = vpop.permute.xlu0 %1135
      %1138 = vset.pattern.permute.xlu0 3
      %1139 = vperm.xlu0 %1138, %v223
      %v1140 = vpop.permute.xlu0 %1139
      %1142 = vset.pattern.permute.xlu0 3
      %1143 = vperm.xlu0 %1142, %v224
      %v1144 = vpop.permute.xlu0 %1143
      %1146 = vset.pattern.permute.xlu0 3
      %1147 = vperm.xlu0 %1146, %v225
      %v1148 = vpop.permute.xlu0 %1147
      %1150 = vset.pattern.permute.xlu0 3
      %1151 = vperm.xlu0 %1150, %v226
      %v1152 = vpop.permute.xlu0 %1151
      %1154 = vset.pattern.permute.xlu0 3
      %1155 = vperm.xlu0 %1154, %v227
      %v1156 = vpop.permute.xlu0 %1155
      %v1158 = vmul.f32 %v196, %v1096
      %v1159 = vmul.f32 %v197, %v1100
      %v1160 = vmul.f32 %v198, %v1104
      %v1161 = vmul.f32 %v199, %v1108
      %v1162 = vmul.f32 %v200, %v1112
      %v1163 = vmul.f32 %v201, %v1116
      %v1164 = vmul.f32 %v202, %v1120
      %v1165 = vmul.f32 %v203, %v1124
      %v1166 = vmul.f32 %v204, %v1128
      %v1167 = vmul.f32 %v205, %v1132
      %v1168 = vmul.f32 %v206, %v1136
      %v1169 = vmul.f32 %v207, %v1140
      %v1170 = vmul.f32 %v208, %v1144
      %v1171 = vmul.f32 %v209, %v1148
      %v1172 = vmul.f32 %v210, %v1152
      %v1173 = vmul.f32 %v211, %v1156
      %s1174 = scalar_lea.vmem %s2, 96
      %v1175 = vld [vmem:[%s1174] sm:$0xff]
      %v1176 = vld [vmem:[%s1174 + $0x8] sm:$0xff]
      %v1177 = vld [vmem:[%s1174 + $0x10] sm:$0xff]
      %v1178 = vld [vmem:[%s1174 + $0x18] sm:$0xff]
      %v1180 = vsel %vm413, %v1158, 0
      %v1183 = vsel %vm413, %v1159, 0
      %v1186 = vsel %vm413, %v1160, 0
      %v1189 = vsel %vm413, %v1161, 0
      %v1192 = vsel %vm413, %v1162, 0
      %v1195 = vsel %vm413, %v1163, 0
      %v1198 = vsel %vm413, %v1164, 0
      %v1201 = vsel %vm413, %v1165, 0
      %v1204 = vsel %vm413, %v1166, 0
      %v1207 = vsel %vm413, %v1167, 0
      %v1210 = vsel %vm413, %v1168, 0
      %v1213 = vsel %vm413, %v1169, 0
      %v1216 = vsel %vm413, %v1170, 0
      %v1219 = vsel %vm413, %v1171, 0
      %v1222 = vsel %vm413, %v1172, 0
      %v1225 = vsel %vm413, %v1173, 0
      %1227 = vmatprep.subr.mxu0 0.0
      %1228 = vmatpush1.msra.mxu0 %v1175
      %1229 = vmatprep.subr.mxu0 0.0
      %1230 = vmatpush1.msra.mxu0 %v1176
      %1231 = vmatprep.subr.mxu0 0.0
      %1232 = vmatpush1.msra.mxu0 %v1177
      %1233 = vmatprep.subr.mxu0 0.0
      %1234 = vmatpush1.msra.mxu0 %v1178
      %1235 = vmatprep.subr.mxu0 0.0
      %1236 = vmatpush1.msra.mxu0 0.0
      %1237 = vmatprep.subr.mxu0 0.0
      %1238 = vmatpush1.msra.mxu0 0.0
      %1239 = vmatprep.subr.mxu0 0.0
      %1240 = vmatpush1.msra.mxu0 0.0
      %1241 = vmatprep.subr.mxu0 0.0
      %1242 = vmatpush1.msra.mxu0 0.0
      %1243 = vmatprep.subr.mxu0 0.0
      %1244 = vmatpush1.msra.mxu0 0.0
      %1245 = vmatprep.subr.mxu0 0.0
      %1246 = vmatpush1.msra.mxu0 0.0
      %1247 = vmatprep.subr.mxu0 0.0
      %1248 = vmatpush1.msra.mxu0 0.0
      %1249 = vmatprep.subr.mxu0 0.0
      %1250 = vmatpush1.msra.mxu0 0.0
      %1251 = vmatprep.subr.mxu0 0.0
      %1252 = vmatpush1.msra.mxu0 0.0
      %1253 = vmatprep.subr.mxu0 0.0
      %1254 = vmatpush1.msra.mxu0 0.0
      %1255 = vmatprep.subr.mxu0 0.0
      %1256 = vmatpush1.msra.mxu0 0.0
      %1257 = vmatprep.subr.mxu0 0.0
      %1258 = vmatpush1.msra.mxu0 0.0
      %1259 = vmatprep.subr.mxu0 0.0
      %1260 = vmatpush1.msra.mxu0 0.0
      %1261 = vmatprep.subr.mxu0 0.0
      %1262 = vmatpush1.msra.mxu0 0.0
      %1263 = vmatprep.subr.mxu0 0.0
      %1264 = vmatpush1.msra.mxu0 0.0
      %1265 = vmatprep.subr.mxu0 0.0
      %1266 = vmatpush1.msra.mxu0 0.0
      %1267 = vmatprep.subr.mxu0 0.0
      %1268 = vmatpush1.msra.mxu0 0.0
      %1269 = vmatprep.subr.mxu0 0.0
      %1270 = vmatpush1.msra.mxu0 0.0
      %1271 = vmatprep.subr.mxu0 0.0
      %1272 = vmatpush1.msra.mxu0 0.0
      %1273 = vmatprep.subr.mxu0 0.0
      %1274 = vmatpush1.msra.mxu0 0.0
      %1275 = vmatprep.subr.mxu0 0.0
      %1276 = vmatpush1.msra.mxu0 0.0
      %1277 = vmatprep.subr.mxu0 0.0
      %1278 = vmatpush1.msra.mxu0 0.0
      %1279 = vmatprep.subr.mxu0 0.0
      %1280 = vmatpush1.msra.mxu0 0.0
      %1281 = vmatprep.subr.mxu0 0.0
      %1282 = vmatpush1.msra.mxu0 0.0
      %1283 = vmatprep.subr.mxu0 0.0
      %1284 = vmatpush1.msra.mxu0 0.0
      %1285 = vmatprep.subr.mxu0 0.0
      %1286 = vmatpush1.msra.mxu0 0.0
      %1287 = vmatprep.subr.mxu0 0.0
      %1288 = vmatpush1.msra.mxu0 0.0
      %1289 = vmatprep.subr.mxu0 0.0
      %1290 = vmatpush1.msra.mxu0 0.0
      %1291 = vmatprep.mubr.f32.mxu0 0.0
      %1292 = vmatmul.mubr.f32.gmra.mrb[0].mxu0 %v1180
      %v1293 = vpop.f32.mrb[0].mxu0
      %v1294 = vadd.f32 0.0, %v1293
      %v1295 = vpop.f32.mrb[0].mxu0
      %1296 = vmatprep.mubr.f32.mxu0 0.0
      %1297 = vmatmul.mubr.f32.gmra.mrb[0].mxu0 %v1183
      %v1298 = vpop.f32.mrb[0].mxu0
      %v1299 = vadd.f32 0.0, %v1298
      %v1300 = vpop.f32.mrb[0].mxu0
      %1301 = vmatprep.mubr.f32.mxu0 0.0
      %1302 = vmatmul.mubr.f32.gmra.mrb[0].mxu0 %v1186
      %v1303 = vpop.f32.mrb[0].mxu0
      %v1304 = vadd.f32 0.0, %v1303
      %v1305 = vpop.f32.mrb[0].mxu0
      %1306 = vmatprep.mubr.f32.mxu0 0.0
      %1307 = vmatmul.mubr.f32.gmra.mrb[0].mxu0 %v1189
      %v1308 = vpop.f32.mrb[0].mxu0
      %v1309 = vadd.f32 0.0, %v1308
      %v1310 = vpop.f32.mrb[0].mxu0
      %1311 = vmatprep.mubr.f32.mxu0 0.0
      %1312 = vmatmul.mubr.f32.gmra.mrb[0].mxu0 %v1192
      %v1313 = vpop.f32.mrb[0].mxu0
      %v1314 = vadd.f32 0.0, %v1313
      %v1315 = vpop.f32.mrb[0].mxu0
      %1316 = vmatprep.mubr.f32.mxu0 0.0
      %1317 = vmatmul.mubr.f32.gmra.mrb[0].mxu0 %v1195
      %v1318 = vpop.f32.mrb[0].mxu0
      %v1319 = vadd.f32 0.0, %v1318
      %v1320 = vpop.f32.mrb[0].mxu0
      %1321 = vmatprep.mubr.f32.mxu0 0.0
      %1322 = vmatmul.mubr.f32.gmra.mrb[0].mxu0 %v1198
      %v1323 = vpop.f32.mrb[0].mxu0
      %v1324 = vadd.f32 0.0, %v1323
      %v1325 = vpop.f32.mrb[0].mxu0
      %1326 = vmatprep.mubr.f32.mxu0 0.0
      %1327 = vmatmul.mubr.f32.gmra.mrb[0].mxu0 %v1201
      %v1328 = vpop.f32.mrb[0].mxu0
      %v1329 = vadd.f32 0.0, %v1328
      %v1330 = vpop.f32.mrb[0].mxu0
      %1331 = vmatprep.mubr.f32.mxu0 0.0
      %1332 = vmatmul.mubr.f32.gmra.mrb[0].mxu0 %v1204
      %v1333 = vpop.f32.mrb[0].mxu0
      %v1334 = vadd.f32 0.0, %v1333
      %v1335 = vpop.f32.mrb[0].mxu0
      %1336 = vmatprep.mubr.f32.mxu0 0.0
      %1337 = vmatmul.mubr.f32.gmra.mrb[0].mxu0 %v1207
      %v1338 = vpop.f32.mrb[0].mxu0
      %v1339 = vadd.f32 0.0, %v1338
      %v1340 = vpop.f32.mrb[0].mxu0
      %1341 = vmatprep.mubr.f32.mxu0 0.0
      %1342 = vmatmul.mubr.f32.gmra.mrb[0].mxu0 %v1210
      %v1343 = vpop.f32.mrb[0].mxu0
      %v1344 = vadd.f32 0.0, %v1343
      %v1345 = vpop.f32.mrb[0].mxu0
      %1346 = vmatprep.mubr.f32.mxu0 0.0
      %1347 = vmatmul.mubr.f32.gmra.mrb[0].mxu0 %v1213
      %v1348 = vpop.f32.mrb[0].mxu0
      %v1349 = vadd.f32 0.0, %v1348
      %v1350 = vpop.f32.mrb[0].mxu0
      %1351 = vmatprep.mubr.f32.mxu0 0.0
      %1352 = vmatmul.mubr.f32.gmra.mrb[0].mxu0 %v1216
      %v1353 = vpop.f32.mrb[0].mxu0
      %v1354 = vadd.f32 0.0, %v1353
      %v1355 = vpop.f32.mrb[0].mxu0
      %1356 = vmatprep.mubr.f32.mxu0 0.0
      %1357 = vmatmul.mubr.f32.gmra.mrb[0].mxu0 %v1219
      %v1358 = vpop.f32.mrb[0].mxu0
      %v1359 = vadd.f32 0.0, %v1358
      %v1360 = vpop.f32.mrb[0].mxu0
      %1361 = vmatprep.mubr.f32.mxu0 0.0
      %1362 = vmatmul.mubr.f32.gmra.mrb[0].mxu0 %v1222
      %v1363 = vpop.f32.mrb[0].mxu0
      %v1364 = vadd.f32 0.0, %v1363
      %v1365 = vpop.f32.mrb[0].mxu0
      %1366 = vmatprep.mubr.f32.mxu0 0.0
      %1367 = vmatmul.mubr.f32.gmra.mrb[0].mxu0 %v1225
      %v1368 = vpop.f32.mrb[0].mxu0
      %v1369 = vadd.f32 0.0, %v1368
      %v1370 = vpop.f32.mrb[0].mxu0
      %1371 = vdwg.mxu0
      %v1372 = vadd.f32 %v1078, %v1294
      %v1373 = vadd.f32 %v1079, %v1299
      %v1374 = vadd.f32 %v1080, %v1304
      %v1375 = vadd.f32 %v1081, %v1309
      %v1376 = vadd.f32 %v1082, %v1314
      %v1377 = vadd.f32 %v1083, %v1319
      %v1378 = vadd.f32 %v1084, %v1324
      %v1379 = vadd.f32 %v1085, %v1329
      %v1380 = vadd.f32 %v1086, %v1334
      %v1381 = vadd.f32 %v1087, %v1339
      %v1382 = vadd.f32 %v1088, %v1344
      %v1383 = vadd.f32 %v1089, %v1349
      %v1384 = vadd.f32 %v1090, %v1354
      %v1385 = vadd.f32 %v1091, %v1359
      %v1386 = vadd.f32 %v1092, %v1364
      %v1387 = vadd.f32 %v1093, %v1369
      %vm1388 = vcmask 719872
      %1389 = vst.msk [vmem:[%s194] sm:$0xff] %vm1388, %v1372
      %1390 = vst.msk [vmem:[%s194 + $0x8] sm:$0xff] %vm1388, %v1373
      %1391 = vst.msk [vmem:[%s194 + $0x10] sm:$0xff] %vm1388, %v1374
      %1392 = vst.msk [vmem:[%s194 + $0x18] sm:$0xff] %vm1388, %v1375
      %1393 = vst.msk [vmem:[%s194 + $0x20] sm:$0xff] %vm1388, %v1376
      %1394 = vst.msk [vmem:[%s194 + $0x28] sm:$0xff] %vm1388, %v1377
      %1395 = vst.msk [vmem:[%s194 + $0x30] sm:$0xff] %vm1388, %v1378
      %1396 = vst.msk [vmem:[%s194 + $0x38] sm:$0xff] %vm1388, %v1379
      %1397 = vst.msk [vmem:[%s194 + $0x40] sm:$0xff] %vm1388, %v1380
      %1398 = vst.msk [vmem:[%s194 + $0x48] sm:$0xff] %vm1388, %v1381
      %1399 = vst.msk [vmem:[%s194 + $0x50] sm:$0xff] %vm1388, %v1382
      %1400 = vst.msk [vmem:[%s194 + $0x58] sm:$0xff] %vm1388, %v1383
      %1401 = vst.msk [vmem:[%s194 + $0x60] sm:$0xff] %vm1388, %v1384
      %1402 = vst.msk [vmem:[%s194 + $0x68] sm:$0xff] %vm1388, %v1385
      %1403 = vst.msk [vmem:[%s194 + $0x70] sm:$0xff] %vm1388, %v1386
      %1404 = vst.msk [vmem:[%s194 + $0x78] sm:$0xff] %vm1388, %v1387
      %s1405 = smul.u32 16, %s14
      %p1406 = scmp.lt.s32.totalorder %s1405, 31
      %s1407 = scalar_select %p1406, %s1405, 31
      %s1408 = smul.addr %s1407, 8
      %s1409 = scalar_lea.vmem %s3, %s1408
      // Predicated region
      $region33: #{tpu_custom_call.1} parent=31 // pred_check
        %p1410 = pneg %p105
      $region34: #{tpu_custom_call.1} parent=31 // pred_check_branch
        %1412 = sbr.rel (%p1410) target = $region36
      $region35: #{tpu_custom_call.1} parent=31 // pred_region
        %s1413 = smul.u32 16, %s14
      $region36: #{tpu_custom_call.1} parent=31 // pred_fallthru
        _
    $region32: #{tpu_custom_call.1} parent=5 // pred_fallthru
      _
    %p1414 = scmp.le.s32.totalorder 2, %s9
    // Predicated region
    $region37: #{tpu_custom_call.1} parent=5 // pred_check
      %p1415 = pneg %p1414
    $region38: #{tpu_custom_call.1} parent=5 // pred_check_branch
      %1417 = sbr.rel (%p1415) target = $region40
    $region39: #{tpu_custom_call.1} parent=5 // pred_region
      %s1418 = ssub.s32 %s9, 2
      // Predicated region
      $region41: #{tpu_custom_call.1} parent=39 // pred_check
        %p1419 = pneg %p111
      $region42: #{tpu_custom_call.1} parent=39 // pred_check_branch
        %1421 = sbr.rel (%p1419) target = $region44
      $region43: #{tpu_custom_call.1} parent=39 // pred_region
        %s1422 = smul.u32 16, %s15
        %p1423 = scmp.lt.s32.totalorder %s1422, 31
        %s1424 = scalar_select %p1423, %s1422, 31
        %s1425 = smul.addr %s1424, 8
        %s1426 = scalar_lea.vmem %s3, %s1425
      $region44: #{tpu_custom_call.1} parent=39 // pred_fallthru
        _
    $region40: #{tpu_custom_call.1} parent=5 // pred_fallthru
      _
  $region6: #{tpu_custom_call.1} parent=0 // loop_footer
    %s13 = sadd.s32 1, %s9
  $region7: #{tpu_custom_call.1} parent=0 // loop_footer_branch
    %8 = sbr.rel target = $region3
  $region8: #{tpu_custom_call.1} parent=0 // loop_exit
    _

</llo_original>
